<compile_context>
chip_gen: v5e
topology: v5e:2x2
jax: 0.10.0
libtpu: 0.0.40
codegen_flags: <defaults>
</compile_context>

<pallas_src>
import jax
import jax.numpy as jnp
from jax.experimental import pallas as pl
from jax.experimental.pallas import tpu as pltpu


# Candidate lane widths (last dim of the 2-D flat view), widest first.
_LANE_CANDIDATES = (32768, 16384, 8192, 4096, 2048, 1024, 512, 256, 128)

# Target bytes per block (per buffer).  Double-buffered in + out => ~4x this
# resident in VMEM, comfortably inside the 32 MiB scoped-VMEM default on
# v5e/v6e and under v7x's 64 MiB physical VMEM.
_TARGET_BLOCK_BYTES = 4 * 1024 * 1024

# Lane-block width for the ragged fallback (numel not a multiple of 128).
_RAGGED_BLOCK_COLS = 64 * 1024  # multiple of 128


def _copy_kernel(x_ref, o_ref):
    # Pure data movement: identity copy of the current VMEM block.
    o_ref[...] = x_ref[...]


def _resolve_shape(numel, shape):
    """Resolve a torch-style shape (may contain a single -1)."""
    shape = tuple(int(s) for s in shape)
    if shape.count(-1) > 1:
        raise ValueError("only one dimension can be inferred")
    if -1 in shape:
        known = 1
        for s in shape:
            if s != -1:
                known *= s
        if known == 0 or numel % known != 0:
            raise ValueError(f"cannot reshape {numel} elements into {shape}")
        shape = tuple(numel // known if s == -1 else s for s in shape)
    prod = 1
    for s in shape:
        prod *= s
    if prod != numel:
        raise ValueError(f"cannot reshape {numel} elements into {shape}")
    return shape


def _sublane_multiple(dtype):
    """Rows needed for full vreg packing: f32 -> 8, bf16 -> 16, int8 -> 32."""
    itemsize = jnp.dtype(dtype).itemsize
    return max(8, 32 // max(1, itemsize))


def _pick_layout(numel, dtype):
    """Pick (rows, cols, block_rows, block_cols) for the flat 2-D copy."""
    itemsize = jnp.dtype(dtype).itemsize
    sub = _sublane_multiple(dtype)

    cols = None
    for c in _LANE_CANDIDATES:
        if numel % c == 0:
            cols = c
            break

    if cols is None:
        # numel is not a multiple of 128: view as one lane-major row and tile
        # along lanes; the ragged edge block is masked by Pallas (no pad).
        rows, cols = 1, numel
        block_cols = cols if cols <= _RAGGED_BLOCK_COLS else _RAGGED_BLOCK_COLS
        return rows, cols, 1, block_cols

    rows = numel // cols
    bytes_per_row = cols * itemsize
    block_rows = max(1, _TARGET_BLOCK_BYTES // bytes_per_row)
    block_rows = (block_rows // sub) * sub
    if block_rows == 0:
        block_rows = sub
    if block_rows >= rows:
        block_rows = rows  # block equal to the full dim is always legal
    return rows, cols, block_rows, cols


def reshape_pallas(x, shape, *, force_copy=True):
    """Equivalent of torch.Tensor.view(shape) for a contiguous tensor."""
    numel = x.size
    target = _resolve_shape(numel, shape)

    if not force_copy or numel == 0:
        # Metadata-only path (what .view() really is); zero HBM traffic.
        return jnp.reshape(x, target)

    rows, cols, block_rows, block_cols = _pick_layout(numel, x.dtype)
    flat2d = jnp.reshape(x, (rows, cols))  # metadata-only for contiguous input

    grid = (pl.cdiv(rows, block_rows), pl.cdiv(cols, block_cols))
    itemsize = jnp.dtype(x.dtype).itemsize

    out2d = pl.pallas_call(
        _copy_kernel,
        out_shape=jax.ShapeDtypeStruct(flat2d.shape, flat2d.dtype),
        grid_spec=pltpu.PrefetchScalarGridSpec(
            num_scalar_prefetch=0,
            grid=grid,
            in_specs=[pl.BlockSpec((block_rows, block_cols),
                                   lambda i, j: (i, j))],
            out_specs=pl.BlockSpec((block_rows, block_cols),
                                   lambda i, j: (i, j)),
        ),
        compiler_params=pltpu.CompilerParams(
            dimension_semantics=("parallel", "parallel"),
            vmem_limit_bytes=32 * 1024 * 1024,
        ),
        cost_estimate=pl.CostEstimate(
            flops=0,
            transcendentals=0,
            bytes_accessed=2 * numel * itemsize,
        ),
    )(flat2d)

    # Final shape reinterpretation is metadata-only glue (matches .view()).
    return jnp.reshape(out2d, target)


class Reshape:
    """JAX/Pallas port of the PyTorch Reshape module."""

    def __init__(self, *args):
        self.shape = args

    def __call__(self, x):
        return reshape_pallas(x, self.shape)


if __name__ == "__main__":
    key = jax.random.PRNGKey(0)
    k1, k2, k3, k4 = jax.random.split(key, 4)

    # Small conv-like NCHW input: batch=2, channels=4, spatial=16x16.
    x = jax.random.normal(k1, (2, 4, 16, 16), dtype=jnp.float32)
    y = Reshape(2, -1)(x)
    jax.block_until_ready(y)
    assert y.shape == (2, 4 * 16 * 16), y.shape
    assert y.dtype == x.dtype
    assert bool(jnp.array_equal(y, jnp.reshape(x, (2, -1))))

    # Non-lane-aligned total (ragged path, no pad/slice) with a 2-D target.
    x2 = jax.random.normal(k2, (2, 3, 5, 7), dtype=jnp.float32)
    y2 = Reshape(6, 35)(x2)
    jax.block_until_ready(y2)
    assert bool(jnp.array_equal(y2, jnp.reshape(x2, (6, 35))))

    # Larger activation to exercise the multi-block (grid > 1) tiled path.
    x3 = jax.random.normal(k3, (16, 16, 64, 128), dtype=jnp.float32)
    y3 = Reshape(16, -1)(x3)
    jax.block_until_ready(y3)
    assert bool(jnp.array_equal(y3, jnp.reshape(x3, (16, -1))))

    # bf16 input exercises the dtype-aware sublane multiple (16 rows).
    x4 = jax.random.normal(k4, (2, 4, 16, 16), dtype=jnp.bfloat16)
    y4 = Reshape(-1)(x4)
    jax.block_until_ready(y4)
    assert y4.shape == (2 * 4 * 16 * 16,)
    assert bool(jnp.array_equal(y4, jnp.reshape(x4, (-1,))))

    print("KERNEL_OK")
</pallas_src>

<mosaic_0001>
module attributes {stable_mosaic.version = 11 : i64} {
  func.func @_copy_kernel(%arg0: i32, %arg1: i32, %arg2: memref<1x2048xf32, #tpu.memory_space<vmem>>, %arg3: memref<1x2048xf32, #tpu.memory_space<vmem>>) attributes {dimension_semantics = [#tpu.dimension_semantics<parallel>, #tpu.dimension_semantics<parallel>], iteration_bounds = array<i64: 1, 1>, scalar_prefetch = 0 : i64, scratch_operands = 0 : i64, tpu.core_type = #tpu.core_type<tc>, window_params = [{transform_indices = @transform_0, window_bounds = array<i64: 1, 2048>}, {transform_indices = @transform_1, window_bounds = array<i64: 1, 2048>}]} {
    %c0 = arith.constant 0 : index
    %c0_0 = arith.constant 0 : index
    %0 = vector.load %arg2[%c0, %c0_0] : memref<1x2048xf32, #tpu.memory_space<vmem>>, vector<1x2048xf32>
    %c0_1 = arith.constant 0 : index
    %c0_2 = arith.constant 0 : index
    %1 = vector.load %arg3[%c0_1, %c0_2] : memref<1x2048xf32, #tpu.memory_space<vmem>>, vector<1x2048xf32>
    tpu.vector_store %arg3[%c0_1, %c0_2], %0 {strides = array<i32>} : memref<1x2048xf32, #tpu.memory_space<vmem>>, vector<1x2048xf32>,
    return
  }
  func.func @transform_0(%arg0: i32, %arg1: i32) -> (i32, i32) {
    %c0_i32 = arith.constant 0 : i32
    return %arg0, %arg1 : i32, i32
  }
  func.func @transform_1(%arg0: i32, %arg1: i32) -> (i32, i32) {
    %c0_i32 = arith.constant 0 : i32
    return %arg0, %arg1 : i32, i32
  }
}

</mosaic_0001>

<llo_original>
// kernel: tpu_custom_call.1
$region0: #{tpu_custom_call.1}
  #allocation0 [shape = 'u32[]', space=smem, size = 0x4, offset = 0x4, fixed_abs, tag = 'smem constant byte address 0x4 - core index']
  #allocation1 [shape = 'u32[72,128]{1,0:T(1,128)}', space=vmem, size = 0x9000, scoped, tag = 'internal scratch']
  %s0 = inlined_call_operand.hbm [shape: f32[1,2048], index: 0, kind: input, shape index: {}]
  %s1 = inlined_call_operand.hbm [shape: f32[1,2048], index: 1, kind: output, shape index: {}]
  %s2 = sld [smem:[#allocation0]]
  $region18: #{tpu_custom_call.1} parent=0
    _
  %s4 = ssub.s32 1, %s2
  %s5 = scalar_select 0, %s4, %s2
  $region1: #{tpu_custom_call.1} parent=0
    #allocation2 [shape = 'u8[8192]{0}', space=vmem, size = 0x2000, scoped, tag = 'input window, operand 0, single buffered']
    #allocation3 [shape = 's32[1]{0}', space=sflag, size = 0x4, scoped, tag = 'scoped memory for tpu_custom_call.1']
    #allocation4 [shape = 's32[1]{0}', space=sflag, size = 0x4, scoped, tag = 'scoped memory for tpu_custom_call.1']
    #allocation5 [shape = 'u8[8192]{0}', space=vmem, size = 0x2000, scoped, tag = 'output window, operand 0, single buffered']
    %6 = vsyncpa [#allocation3], 0
    %7 = vsyncpa [#allocation4], 0
    // Predicated region
    $region2: #{tpu_custom_call.1} parent=1 // pred_check
      _
    $region3: #{tpu_custom_call.1} parent=1 // pred_check_branch
      %9 = sbr.rel (0) target = $region5
    $region4: #{tpu_custom_call.1} parent=1 // pred_region
      %11 = vsyncadd [#allocation3], 0
      %s13 = sshll.u32 %s0, 4
      %s14 = int_to_ptr.hbm [resolvable:$true] %s13
      %s15 = sshll.u32 [#allocation2], 4
      %s16 = int_to_ptr.vmem [resolvable:$true] %s15
      %18 = dma.hbm_to_vmem [thread:$0]  %s14, 256, %s16, [#allocation3]
    $region5: #{tpu_custom_call.1} parent=1 // pred_fallthru
      _
    // Predicated region
    $region6: #{tpu_custom_call.1} parent=1 // pred_check
      _
    $region7: #{tpu_custom_call.1} parent=1 // pred_check_branch
      %20 = sbr.rel (0) target = $region9
    $region8: #{tpu_custom_call.1} parent=1 // pred_region
      %22 = dma.done [#allocation3], 256
    $region9: #{tpu_custom_call.1} parent=1 // pred_fallthru
      _
    %v23 = vld [vmem:[#allocation2] sm:$0xff]
    %v24 = vld [vmem:[#allocation2 + $0x8] sm:$0xff]
    %25 = vst [vmem:[#allocation5] sm:$0xff] %v23
    %26 = vst [vmem:[#allocation5 + $0x8] sm:$0xff] %v24
    // Predicated region
    $region10: #{tpu_custom_call.1} parent=1 // pred_check
      _
    $region11: #{tpu_custom_call.1} parent=1 // pred_check_branch
      %28 = sbr.rel (0) target = $region13
    $region12: #{tpu_custom_call.1} parent=1 // pred_region
      %30 = vsyncadd [#allocation4], 0
      %s32 = sshll.u32 [#allocation5], 4
      %s33 = int_to_ptr.vmem [resolvable:$true] %s32
      %s34 = sshll.u32 %s1, 4
      %s35 = int_to_ptr.hbm [resolvable:$true] %s34
      %37 = dma.vmem_to_hbm [thread:$0]  %s33, 256, %s35, [#allocation4]
    $region13: #{tpu_custom_call.1} parent=1 // pred_fallthru
      _
    // Predicated region
    $region14: #{tpu_custom_call.1} parent=1 // pred_check
      _
    $region15: #{tpu_custom_call.1} parent=1 // pred_check_branch
      %39 = sbr.rel (0) target = $region17
    $region16: #{tpu_custom_call.1} parent=1 // pred_region
      %41 = dma.done [#allocation4], 256
    $region17: #{tpu_custom_call.1} parent=1 // pred_fallthru
      _
    %42 = vsyncpa [#allocation3], 1
    %43 = vsyncpa [#allocation4], 1

</llo_original>
